<compile_context>
chip_gen: v6e
topology: v6e:2x2x1
jax: 0.10.0
libtpu: 0.0.40
codegen_flags: <defaults>
</compile_context>

<pallas_src>
import jax
import jax.numpy as jnp
from jax.experimental import pallas as pl
from jax.experimental.pallas import tpu as pltpu

LANE = 128
SUBLANE = 8


def _round_up(n, m):
    return ((n + m - 1) // m) * m


def lstm_kernel(x_ref, c0_ref, h0_ref, wx_ref, wh_ref, b_ref,
                states_ref, mem_ref, state_ref, c_scr, h_scr):
    t = pl.program_id(0)
    Hp = h_scr.shape[1]

    # Load the initial carry once; c_scr / h_scr persist across grid steps.
    @pl.when(t == 0)
    def _():
        c_scr[...] = c0_ref[...]
        h_scr[...] = h0_ref[...]

    x = x_ref[...]          # (Bp, V)
    h = h_scr[...]          # (Bp, Hp), f32

    # Fused gate pre-activations: two MXU matmuls + one bias add -> (Bp, 4*Hp)
    gates = (jnp.dot(x, wx_ref[...], preferred_element_type=jnp.float32)
             + jnp.dot(h, wh_ref[...], preferred_element_type=jnp.float32)
             + b_ref[...])

    f = jax.nn.sigmoid(gates[:, 0 * Hp:1 * Hp])
    i = jax.nn.sigmoid(gates[:, 1 * Hp:2 * Hp])
    o = jax.nn.sigmoid(gates[:, 2 * Hp:3 * Hp])
    n = jnp.tanh(gates[:, 3 * Hp:4 * Hp])

    c = f * c_scr[...] + i * n
    h_new = o * jnp.tanh(c)

    c_scr[...] = c
    h_scr[...] = h_new

    # Per-step hidden state goes to its own time-indexed output block; the
    # final (memory, state) outputs stay resident and are written back once.
    states_ref[...] = h_new.astype(states_ref.dtype)
    mem_ref[...] = c.astype(mem_ref.dtype)
    state_ref[...] = h_new.astype(state_ref.dtype)


def my_lstm_forward(x, initial_state, params):
    """x: (T, B, V). Returns (states (T,B,H), (memory (B,H), state (B,H)))."""
    T, B, V = x.shape
    H = params["weight_xf"].shape[1]
    dtype = x.dtype

    if initial_state is not None:
        memory0, state0 = initial_state
    else:
        memory0 = jnp.zeros((B, H), dtype=dtype)
        state0 = jnp.zeros((B, H), dtype=dtype)

    Hp = _round_up(H, LANE)      # lane-dense hidden dim
    Bp = _round_up(B, SUBLANE)   # sublane-aligned batch

    def pad_wx(w):   # (V, H) -> (V, Hp)
        return jnp.pad(w, ((0, 0), (0, Hp - H)))

    def pad_wh(w):   # (H, H) -> (Hp, Hp)
        return jnp.pad(w, ((0, Hp - H), (0, Hp - H)))

    def pad_b(b):    # (1, H) -> (1, Hp)
        return jnp.pad(b, ((0, 0), (0, Hp - H)))

    gate_order = ("f", "i", "o", "n")
    wx_fused = jnp.concatenate(
        [pad_wx(params[f"weight_x{g}"]) for g in gate_order], axis=1).astype(jnp.float32)
    wh_fused = jnp.concatenate(
        [pad_wh(params[f"weight_h{g}"]) for g in gate_order], axis=1).astype(jnp.float32)
    b_fused = jnp.concatenate(
        [pad_b(params[f"bias_{g}"]) for g in gate_order], axis=1).astype(jnp.float32)

    x_p = jnp.pad(x, ((0, 0), (0, Bp - B), (0, 0))).astype(jnp.float32)
    c0_p = jnp.pad(memory0, ((0, Bp - B), (0, Hp - H))).astype(jnp.float32)
    h0_p = jnp.pad(state0, ((0, Bp - B), (0, Hp - H))).astype(jnp.float32)

    out_shapes = (
        jax.ShapeDtypeStruct((T, Bp, Hp), jnp.float32),   # per-step hidden states
        jax.ShapeDtypeStruct((Bp, Hp), jnp.float32),      # final memory (c)
        jax.ShapeDtypeStruct((Bp, Hp), jnp.float32),      # final state  (h)
    )

    grid_spec = pltpu.PrefetchScalarGridSpec(
        num_scalar_prefetch=0,
        grid=(T,),
        in_specs=[
            pl.BlockSpec((None, Bp, V), lambda t: (t, 0, 0)),   # x_t (new block each step)
            pl.BlockSpec((Bp, Hp), lambda t: (0, 0)),           # c0  (resident)
            pl.BlockSpec((Bp, Hp), lambda t: (0, 0)),           # h0  (resident)
            pl.BlockSpec((V, 4 * Hp), lambda t: (0, 0)),        # fused Wx (resident)
            pl.BlockSpec((Hp, 4 * Hp), lambda t: (0, 0)),       # fused Wh (resident)
            pl.BlockSpec((1, 4 * Hp), lambda t: (0, 0)),        # fused bias (resident)
        ],
        out_specs=[
            pl.BlockSpec((None, Bp, Hp), lambda t: (t, 0, 0)),  # states[t]
            pl.BlockSpec((Bp, Hp), lambda t: (0, 0)),           # final memory
            pl.BlockSpec((Bp, Hp), lambda t: (0, 0)),           # final state
        ],
        scratch_shapes=[
            pltpu.VMEM((Bp, Hp), jnp.float32),   # c carry
            pltpu.VMEM((Bp, Hp), jnp.float32),   # h carry
        ],
    )

    states_p, mem_p, state_p = pl.pallas_call(
        lstm_kernel,
        out_shape=out_shapes,
        grid_spec=grid_spec,
        compiler_params=pltpu.CompilerParams(
            dimension_semantics=("arbitrary",)),   # time loop is sequential
    )(x_p, c0_p, h0_p, wx_fused, wh_fused, b_fused)

    states = states_p[:, :B, :H].astype(dtype)
    memory = mem_p[:B, :H].astype(dtype)
    state = state_p[:B, :H].astype(dtype)
    return states, (memory, state)


def lstm_ref(x, memory0, state0, p):
    """Pure-JAX reference mirroring the PyTorch module."""
    c, h = memory0, state0
    hs = []
    for t in range(x.shape[0]):
        xt = x[t]
        f = jax.nn.sigmoid(xt @ p["weight_xf"] + h @ p["weight_hf"] + p["bias_f"])
        i = jax.nn.sigmoid(xt @ p["weight_xi"] + h @ p["weight_hi"] + p["bias_i"])
        o = jax.nn.sigmoid(xt @ p["weight_xo"] + h @ p["weight_ho"] + p["bias_o"])
        n = jnp.tanh(xt @ p["weight_xn"] + h @ p["weight_hn"] + p["bias_n"])
        c = f * c + i * n
        h = o * jnp.tanh(c)
        hs.append(h)
    return jnp.stack(hs), c, h


if __name__ == "__main__":
    seq_len = 8
    batch = 8
    input_size = 16
    hidden_size = 32

    key = jax.random.PRNGKey(0)
    keys = jax.random.split(key, 11)

    def w(k, shape):
        return 0.01 * jax.random.normal(k, shape, dtype=jnp.float32)

    params = {
        "weight_xf": w(keys[0], (input_size, hidden_size)),
        "weight_hf": w(keys[1], (hidden_size, hidden_size)),
        "bias_f": jnp.zeros((1, hidden_size), dtype=jnp.float32),
        "weight_xi": w(keys[2], (input_size, hidden_size)),
        "weight_hi": w(keys[3], (hidden_size, hidden_size)),
        "bias_i": jnp.zeros((1, hidden_size), dtype=jnp.float32),
        "weight_xo": w(keys[4], (input_size, hidden_size)),
        "weight_ho": w(keys[5], (hidden_size, hidden_size)),
        "bias_o": jnp.zeros((1, hidden_size), dtype=jnp.float32),
        "weight_xn": w(keys[6], (input_size, hidden_size)),
        "weight_hn": w(keys[7], (hidden_size, hidden_size)),
        "bias_n": jnp.zeros((1, hidden_size), dtype=jnp.float32),
    }

    x = jax.random.normal(keys[8], (seq_len, batch, input_size), dtype=jnp.float32)
    memory0 = jax.random.normal(keys[9], (batch, hidden_size), dtype=jnp.float32)
    state0 = jax.random.normal(keys[10], (batch, hidden_size), dtype=jnp.float32)

    states, (memory, state) = my_lstm_forward(x, (memory0, state0), params)
    (states, memory, state) = jax.block_until_ready((states, memory, state))

    ref_states, ref_mem, ref_state = lstm_ref(x, memory0, state0, params)
    assert states.shape == (seq_len, batch, hidden_size)
    assert memory.shape == (batch, hidden_size)
    assert state.shape == (batch, hidden_size)
    assert jnp.allclose(states, ref_states, atol=1e-5, rtol=1e-5)
    assert jnp.allclose(memory, ref_mem, atol=1e-5, rtol=1e-5)
    assert jnp.allclose(state, ref_state, atol=1e-5, rtol=1e-5)

    print("KERNEL_OK")
</pallas_src>

<mosaic_0001>
module attributes {stable_mosaic.version = 11 : i64} {
  func.func @lstm_kernel(%arg0: i32, %arg1: memref<1x8x16xf32, #tpu.memory_space<vmem>>, %arg2: memref<8x128xf32, #tpu.memory_space<vmem>>, %arg3: memref<8x128xf32, #tpu.memory_space<vmem>>, %arg4: memref<16x512xf32, #tpu.memory_space<vmem>>, %arg5: memref<128x512xf32, #tpu.memory_space<vmem>>, %arg6: memref<1x512xf32, #tpu.memory_space<vmem>>, %arg7: memref<1x8x128xf32, #tpu.memory_space<vmem>>, %arg8: memref<8x128xf32, #tpu.memory_space<vmem>>, %arg9: memref<8x128xf32, #tpu.memory_space<vmem>>, %arg10: memref<8x128xf32, #tpu.memory_space<vmem>>, %arg11: memref<8x128xf32, #tpu.memory_space<vmem>>) attributes {dimension_semantics = [#tpu.dimension_semantics<arbitrary>], iteration_bounds = array<i64: 8>, scalar_prefetch = 0 : i64, scratch_operands = 2 : i64, tpu.core_type = #tpu.core_type<tc>, window_params = [{transform_indices = @transform_0, window_bounds = array<i64: 1, 8, 16>}, {pipeline_mode = #tpu.pipeline_mode<synchronous>, transform_indices = @transform_1, window_bounds = array<i64: 8, 128>}, {pipeline_mode = #tpu.pipeline_mode<synchronous>, transform_indices = @transform_2, window_bounds = array<i64: 8, 128>}, {pipeline_mode = #tpu.pipeline_mode<synchronous>, transform_indices = @transform_3, window_bounds = array<i64: 16, 512>}, {pipeline_mode = #tpu.pipeline_mode<synchronous>, transform_indices = @transform_4, window_bounds = array<i64: 128, 512>}, {pipeline_mode = #tpu.pipeline_mode<synchronous>, transform_indices = @transform_5, window_bounds = array<i64: 1, 512>}, {transform_indices = @transform_6, window_bounds = array<i64: 1, 8, 128>}, {pipeline_mode = #tpu.pipeline_mode<synchronous>, transform_indices = @transform_7, window_bounds = array<i64: 8, 128>}, {pipeline_mode = #tpu.pipeline_mode<synchronous>, transform_indices = @transform_8, window_bounds = array<i64: 8, 128>}]} {
    %c0_i32 = arith.constant 0 : i32
    %0 = arith.cmpi eq, %arg0, %c0_i32 : i32
    %1 = arith.extui %0 : i1 to i32
    %c0_i32_0 = arith.constant 0 : i32
    %2 = arith.cmpi ne, %1, %c0_i32_0 : i32
    scf.if %2 {
      %c0_28 = arith.constant 0 : index
      %c0_29 = arith.constant 0 : index
      %47 = vector.load %arg2[%c0_28, %c0_29] : memref<8x128xf32, #tpu.memory_space<vmem>>, vector<8x128xf32>
      %c0_30 = arith.constant 0 : index
      %c0_31 = arith.constant 0 : index
      %48 = vector.load %arg10[%c0_30, %c0_31] : memref<8x128xf32, #tpu.memory_space<vmem>>, vector<8x128xf32>
      tpu.vector_store %arg10[%c0_30, %c0_31], %47 {strides = array<i32>} : memref<8x128xf32, #tpu.memory_space<vmem>>, vector<8x128xf32>,
      %c0_32 = arith.constant 0 : index
      %c0_33 = arith.constant 0 : index
      %49 = vector.load %arg3[%c0_32, %c0_33] : memref<8x128xf32, #tpu.memory_space<vmem>>, vector<8x128xf32>
      %c0_34 = arith.constant 0 : index
      %c0_35 = arith.constant 0 : index
      %50 = vector.load %arg11[%c0_34, %c0_35] : memref<8x128xf32, #tpu.memory_space<vmem>>, vector<8x128xf32>
      tpu.vector_store %arg11[%c0_34, %c0_35], %49 {strides = array<i32>} : memref<8x128xf32, #tpu.memory_space<vmem>>, vector<8x128xf32>,
    } else {
    }
    %c0 = arith.constant 0 : index
    %c0_1 = arith.constant 0 : index
    %c0_2 = arith.constant 0 : index
    %3 = vector.load %arg1[%c0, %c0_1, %c0_2] : memref<1x8x16xf32, #tpu.memory_space<vmem>>, vector<1x8x16xf32>
    %4 = vector.shape_cast %3 : vector<1x8x16xf32> to vector<8x16xf32>
    %c0_3 = arith.constant 0 : index
    %c0_4 = arith.constant 0 : index
    %5 = vector.load %arg11[%c0_3, %c0_4] : memref<8x128xf32, #tpu.memory_space<vmem>>, vector<8x128xf32>
    %c0_5 = arith.constant 0 : index
    %c0_6 = arith.constant 0 : index
    %6 = vector.load %arg4[%c0_5, %c0_6] : memref<16x512xf32, #tpu.memory_space<vmem>>, vector<16x512xf32>
    %cst = arith.constant dense<0.000000e+00> : vector<8x512xf32>
    %7 = tpu.matmul %4, %6, %cst {dimension_numbers = #tpu.dot_dimension_numbers<[1], [0], [0], [1], [0, 0, 1, 1], [], []>} : vector<8x16xf32>, vector<16x512xf32>, vector<8x512xf32> -> vector<8x512xf32>
    %c0_7 = arith.constant 0 : index
    %c0_8 = arith.constant 0 : index
    %8 = vector.load %arg5[%c0_7, %c0_8] : memref<128x512xf32, #tpu.memory_space<vmem>>, vector<128x512xf32>
    %cst_9 = arith.constant dense<0.000000e+00> : vector<8x512xf32>
    %9 = tpu.matmul %5, %8, %cst_9 {dimension_numbers = #tpu.dot_dimension_numbers<[1], [0], [0], [1], [0, 0, 1, 1], [], []>} : vector<8x128xf32>, vector<128x512xf32>, vector<8x512xf32> -> vector<8x512xf32>
    %10 = arith.addf %7, %9 : vector<8x512xf32>
    %c0_10 = arith.constant 0 : index
    %c0_11 = arith.constant 0 : index
    %11 = vector.load %arg6[%c0_10, %c0_11] : memref<1x512xf32, #tpu.memory_space<vmem>>, vector<1x512xf32>
    %12 = vector.broadcast %11 : vector<1x512xf32> to vector<8x512xf32>
    %13 = arith.addf %10, %12 : vector<8x512xf32>
    %14 = vector.extract_strided_slice %13 {offsets = [0, 0], sizes = [8, 128], strides = [1, 1]} : vector<8x512xf32> to vector<8x128xf32>
    %15 = arith.negf %14 : vector<8x128xf32>
    %16 = math.exp %15 : vector<8x128xf32>
    %cst_12 = arith.constant 1.000000e+00 : f32
    %17 = vector.broadcast %cst_12 : f32 to vector<8x128xf32>
    %18 = arith.addf %17, %16 : vector<8x128xf32>
    %19 = arith.divf %17, %18 : vector<8x128xf32>
    %20 = vector.extract_strided_slice %13 {offsets = [0, 128], sizes = [8, 128], strides = [1, 1]} : vector<8x512xf32> to vector<8x128xf32>
    %21 = arith.negf %20 : vector<8x128xf32>
    %22 = math.exp %21 : vector<8x128xf32>
    %cst_13 = arith.constant 1.000000e+00 : f32
    %23 = vector.broadcast %cst_13 : f32 to vector<8x128xf32>
    %24 = arith.addf %23, %22 : vector<8x128xf32>
    %25 = arith.divf %23, %24 : vector<8x128xf32>
    %26 = vector.extract_strided_slice %13 {offsets = [0, 256], sizes = [8, 128], strides = [1, 1]} : vector<8x512xf32> to vector<8x128xf32>
    %27 = arith.negf %26 : vector<8x128xf32>
    %28 = math.exp %27 : vector<8x128xf32>
    %cst_14 = arith.constant 1.000000e+00 : f32
    %29 = vector.broadcast %cst_14 : f32 to vector<8x128xf32>
    %30 = arith.addf %29, %28 : vector<8x128xf32>
    %31 = arith.divf %29, %30 : vector<8x128xf32>
    %32 = vector.extract_strided_slice %13 {offsets = [0, 384], sizes = [8, 128], strides = [1, 1]} : vector<8x512xf32> to vector<8x128xf32>
    %33 = math.tanh %32 : vector<8x128xf32>
    %c0_15 = arith.constant 0 : index
    %c0_16 = arith.constant 0 : index
    %34 = vector.load %arg10[%c0_15, %c0_16] : memref<8x128xf32, #tpu.memory_space<vmem>>, vector<8x128xf32>
    %35 = arith.mulf %19, %34 : vector<8x128xf32>
    %36 = arith.mulf %25, %33 : vector<8x128xf32>
    %37 = arith.addf %35, %36 : vector<8x128xf32>
    %38 = math.tanh %37 : vector<8x128xf32>
    %39 = arith.mulf %31, %38 : vector<8x128xf32>
    %c0_17 = arith.constant 0 : index
    %c0_18 = arith.constant 0 : index
    %40 = vector.load %arg10[%c0_17, %c0_18] : memref<8x128xf32, #tpu.memory_space<vmem>>, vector<8x128xf32>
    tpu.vector_store %arg10[%c0_17, %c0_18], %37 {strides = array<i32>} : memref<8x128xf32, #tpu.memory_space<vmem>>, vector<8x128xf32>,
    %c0_19 = arith.constant 0 : index
    %c0_20 = arith.constant 0 : index
    %41 = vector.load %arg11[%c0_19, %c0_20] : memref<8x128xf32, #tpu.memory_space<vmem>>, vector<8x128xf32>
    tpu.vector_store %arg11[%c0_19, %c0_20], %39 {strides = array<i32>} : memref<8x128xf32, #tpu.memory_space<vmem>>, vector<8x128xf32>,
    %c0_21 = arith.constant 0 : index
    %c0_22 = arith.constant 0 : index
    %c0_23 = arith.constant 0 : index
    %42 = vector.load %arg7[%c0_21, %c0_22, %c0_23] : memref<1x8x128xf32, #tpu.memory_space<vmem>>, vector<1x8x128xf32>
    %43 = vector.shape_cast %42 : vector<1x8x128xf32> to vector<8x128xf32>
    %44 = vector.shape_cast %39 : vector<8x128xf32> to vector<1x8x128xf32>
    tpu.vector_store %arg7[%c0_21, %c0_22, %c0_23], %44 {strides = array<i32>} : memref<1x8x128xf32, #tpu.memory_space<vmem>>, vector<1x8x128xf32>,
    %c0_24 = arith.constant 0 : index
    %c0_25 = arith.constant 0 : index
    %45 = vector.load %arg8[%c0_24, %c0_25] : memref<8x128xf32, #tpu.memory_space<vmem>>, vector<8x128xf32>
    tpu.vector_store %arg8[%c0_24, %c0_25], %37 {strides = array<i32>} : memref<8x128xf32, #tpu.memory_space<vmem>>, vector<8x128xf32>,
    %c0_26 = arith.constant 0 : index
    %c0_27 = arith.constant 0 : index
    %46 = vector.load %arg9[%c0_26, %c0_27] : memref<8x128xf32, #tpu.memory_space<vmem>>, vector<8x128xf32>
    tpu.vector_store %arg9[%c0_26, %c0_27], %39 {strides = array<i32>} : memref<8x128xf32, #tpu.memory_space<vmem>>, vector<8x128xf32>,
    return
  }
  func.func @transform_0(%arg0: i32) -> (i32, i32, i32) {
    %c0_i32 = arith.constant 0 : i32
    %c0_i32_0 = arith.constant 0 : i32
    %c0_i32_1 = arith.constant 0 : i32
    return %arg0, %c0_i32, %c0_i32_0 : i32, i32, i32
  }
  func.func @transform_1(%arg0: i32) -> (i32, i32) {
    %c0_i32 = arith.constant 0 : i32
    %c0_i32_0 = arith.constant 0 : i32
    %c0_i32_1 = arith.constant 0 : i32
    return %c0_i32, %c0_i32_0 : i32, i32
  }
  func.func @transform_2(%arg0: i32) -> (i32, i32) {
    %c0_i32 = arith.constant 0 : i32
    %c0_i32_0 = arith.constant 0 : i32
    %c0_i32_1 = arith.constant 0 : i32
    return %c0_i32, %c0_i32_0 : i32, i32
  }
  func.func @transform_3(%arg0: i32) -> (i32, i32) {
    %c0_i32 = arith.constant 0 : i32
    %c0_i32_0 = arith.constant 0 : i32
    %c0_i32_1 = arith.constant 0 : i32
    return %c0_i32, %c0_i32_0 : i32, i32
  }
  func.func @transform_4(%arg0: i32) -> (i32, i32) {
    %c0_i32 = arith.constant 0 : i32
    %c0_i32_0 = arith.constant 0 : i32
    %c0_i32_1 = arith.constant 0 : i32
    return %c0_i32, %c0_i32_0 : i32, i32
  }
  func.func @transform_5(%arg0: i32) -> (i32, i32) {
    %c0_i32 = arith.constant 0 : i32
    %c0_i32_0 = arith.constant 0 : i32
    %c0_i32_1 = arith.constant 0 : i32
    return %c0_i32, %c0_i32_0 : i32, i32
  }
  func.func @transform_6(%arg0: i32) -> (i32, i32, i32) {
    %c0_i32 = arith.constant 0 : i32
    %c0_i32_0 = arith.constant 0 : i32
    %c0_i32_1 = arith.constant 0 : i32
    return %arg0, %c0_i32, %c0_i32_0 : i32, i32, i32
  }
  func.func @transform_7(%arg0: i32) -> (i32, i32) {
    %c0_i32 = arith.constant 0 : i32
    %c0_i32_0 = arith.constant 0 : i32
    %c0_i32_1 = arith.constant 0 : i32
    return %c0_i32, %c0_i32_0 : i32, i32
  }
  func.func @transform_8(%arg0: i32) -> (i32, i32) {
    %c0_i32 = arith.constant 0 : i32
    %c0_i32_0 = arith.constant 0 : i32
    %c0_i32_1 = arith.constant 0 : i32
    return %c0_i32, %c0_i32_0 : i32, i32
  }
}

</mosaic_0001>

<llo_original>
// kernel: tpu_custom_call.1
$region0: #{tpu_custom_call.1}
  #allocation0 [shape = 'u32[]', space=smem, size = 0x4, offset = 0x4, fixed_abs, tag = 'smem constant byte address 0x4 - core index']
  #allocation1 [shape = 'u32[144,128]{1,0:T(1,128)}', space=vmem, size = 0x12000, scoped, tag = 'internal scratch']
  #allocation2 [shape = 'f32[8,128]{1,0:T(8,128)}', space=vmem, size = 0x1000, scoped, tag = 'scratch operand']
  #allocation3 [shape = 'f32[8,128]{1,0:T(8,128)}', space=vmem, size = 0x1000, scoped, tag = 'scratch operand']
  %s0 = inlined_call_operand.hbm [shape: f32[8,8,16], index: 0, kind: input, shape index: {}]
  %s1 = inlined_call_operand.hbm [shape: f32[8,128], index: 1, kind: input, shape index: {}]
  %s2 = inlined_call_operand.hbm [shape: f32[8,128], index: 2, kind: input, shape index: {}]
  %s3 = inlined_call_operand.hbm [shape: f32[16,512], index: 3, kind: input, shape index: {}]
  %s4 = inlined_call_operand.hbm [shape: f32[128,512], index: 4, kind: input, shape index: {}]
  %s5 = inlined_call_operand.vmem [shape: f32[1,512], index: 5, kind: input, shape index: {}]
  %s6 = inlined_call_operand.hbm [shape: f32[8,8,128], index: 6, kind: output, shape index: {0}]
  %s7 = inlined_call_operand.hbm [shape: f32[8,128], index: 7, kind: output, shape index: {1}]
  %s8 = inlined_call_operand.hbm [shape: f32[8,128], index: 8, kind: output, shape index: {2}]
  %9 = xla_tuple %s6, %s7, %s8
  %s10 = sld [smem:[#allocation0]]
  $region97: #{tpu_custom_call.1} parent=0
    _
  %s12 = ssub.s32 1, %s10
  %s13 = scalar_select 0, %s12, %s10
  $region1: #{tpu_custom_call.1} parent=0
    #allocation4 [shape = 'u8[8192]{0}', space=vmem, size = 0x2000, scoped, tag = 'input window, operand 0']
    #allocation5 [shape = 's32[2]{0}', space=sflag, size = 0x8, scoped, tag = 'scoped memory for tpu_custom_call.1']
    #allocation6 [shape = 's32[2]{0}', space=sflag, size = 0x8, scoped, tag = 'scoped memory for tpu_custom_call.1']
    #allocation7 [shape = 'u8[4096]{0}', space=vmem, size = 0x1000, scoped, tag = 'input window, operand 1, single buffered']
    #allocation8 [shape = 's32[1]{0}', space=sflag, size = 0x4, scoped, tag = 'scoped memory for tpu_custom_call.1']
    #allocation9 [shape = 'u8[4096]{0}', space=vmem, size = 0x1000, scoped, tag = 'input window, operand 2, single buffered']
    #allocation10 [shape = 'u8[32768]{0}', space=vmem, size = 0x8000, scoped, tag = 'input window, operand 3, single buffered']
    #allocation11 [shape = 's32[1]{0}', space=sflag, size = 0x4, scoped, tag = 'scoped memory for tpu_custom_call.1']
    #allocation12 [shape = 'u8[262144]{0}', space=vmem, size = 0x40000, scoped, tag = 'input window, operand 4, single buffered']
    #allocation13 [shape = 'u8[8192]{0}', space=vmem, size = 0x2000, scoped, tag = 'output window, operand 0']
    #allocation14 [shape = 'u8[4096]{0}', space=vmem, size = 0x1000, scoped, tag = 'output window, operand 1, single buffered']
    #allocation15 [shape = 's32[1]{0}', space=sflag, size = 0x4, scoped, tag = 'scoped memory for tpu_custom_call.1']
    #allocation16 [shape = 'u8[4096]{0}', space=vmem, size = 0x1000, scoped, tag = 'output window, operand 2, single buffered']
    %14 = vsyncpa [#allocation5], 0
    %s15 = scalar_lea.sflag [#allocation5], 1
    %16 = vsyncpa %s15, 0
    %17 = vsyncpa [#allocation8], 0
    %18 = vsyncpa [#allocation11], 0
    %19 = vsyncpa [#allocation6], 0
    %s20 = scalar_lea.sflag [#allocation6], 1
    %21 = vsyncpa %s20, 0
    %22 = vsyncpa [#allocation15], 0
    loop: start=0, step=1, limit=10
    $region2: #{tpu_custom_call.1} parent=1 // loop_pre_header
      _
    $region3: #{tpu_custom_call.1} parent=1 // loop_header
      %s24 = sphi 0, %s28
      %p25 = scmp.ge.s32.totalorder %s24, 10
      %s34 = sphi 0, %s36
      %s37 = sphi 0, %s34
      %s38 = sphi 0, %s37
      %s54 = sphi 0, %s38
      %s58 = sphi 0, %s58
      %s60 = sphi 0, %s58
      %s61 = sphi 0, %s60
      %s75 = sphi 0, %s61
      %s79 = sphi 0, %s79
      %s81 = sphi 0, %s79
      %s82 = sphi 0, %s81
      %s96 = sphi 0, %s82
      %s100 = sphi 0, %s100
      %s102 = sphi 0, %s100
      %s103 = sphi 0, %s102
      %s117 = sphi 0, %s103
      %s121 = sphi 0, %s121
      %s123 = sphi 0, %s121
      %s124 = sphi 0, %s123
      %s138 = sphi 0, %s124
      %s142 = sphi 0, %s142
      %s144 = sphi 0, %s142
      %s145 = sphi 0, %s144
      %s159 = sphi 0, %s145
      %s165 = sphi 0, %s167
      %s168 = sphi 0, %s165
      %s169 = sphi 0, %s168
      %s185 = sphi 0, %s169
      %s189 = sphi 0, %s189
      %s191 = sphi 0, %s189
      %s192 = sphi 0, %s191
      %s206 = sphi 0, %s192
      %s210 = sphi 0, %s210
      %s212 = sphi 0, %s210
      %s213 = sphi 0, %s212
      %s227 = sphi 0, %s213
    $region4: #{tpu_custom_call.1} parent=1 // loop_header_branch
      %27 = sbr.rel (%p25) target = $region8
    $region5: #{tpu_custom_call.1} parent=1 // loop_body
      %s29 = ssub.s32 %s24, 1
      %s30 = ssub.s32 %s24, 2
      %s31 = sadd.s32 %s24, 1
      %s32 = ssub.s32 %s24, %s31
      %p33 = scmp.eq.s32.totalorder %s32, 0
      %s35 = sadd.s32 %s34, 1
      %s36 = scalar_select %p33, %s34, %s35
      %p39 = pneg %p33
      %p40 = scmp.eq.s32.totalorder %s24, 7
      %p41 = por %p39, %p40
      %p42 = scmp.ne.s32.totalorder %s34, %s37
      %p43 = scmp.eq.s32.totalorder %s24, 0
      %p44 = por %p42, %p43
      %p45 = scmp.ne.s32.totalorder %s34, %s37
      %p46 = scmp.eq.s32.totalorder %s29, 7
      %p47 = por %p45, %p46
      %p48 = scmp.ne.s32.totalorder %s37, %s38
      %p49 = scmp.eq.s32.totalorder %s29, 0
      %p50 = por %p48, %p49
      %p51 = scmp.ne.s32.totalorder %s37, %s38
      %p52 = scmp.eq.s32.totalorder %s30, 7
      %p53 = por %p51, %p52
      %p55 = scmp.ne.s32.totalorder %s38, %s54
      %p56 = scmp.eq.s32.totalorder %s30, 0
      %p57 = por %p55, %p56
      %s59 = sadd.s32 %s58, 1
      %p62 = scmp.eq.s32.totalorder %s24, 7
      %p63 = scmp.ne.s32.totalorder %s58, %s60
      %p64 = scmp.eq.s32.totalorder %s24, 0
      %p65 = por %p63, %p64
      %p66 = scmp.ne.s32.totalorder %s58, %s60
      %p67 = scmp.eq.s32.totalorder %s29, 7
      %p68 = por %p66, %p67
      %p69 = scmp.ne.s32.totalorder %s60, %s61
      %p70 = scmp.eq.s32.totalorder %s29, 0
      %p71 = por %p69, %p70
      %p72 = scmp.ne.s32.totalorder %s60, %s61
      %p73 = scmp.eq.s32.totalorder %s30, 7
      %p74 = por %p72, %p73
      %p76 = scmp.ne.s32.totalorder %s61, %s75
      %p77 = scmp.eq.s32.totalorder %s30, 0
      %p78 = por %p76, %p77
      %s80 = sadd.s32 %s79, 1
      %p83 = scmp.eq.s32.totalorder %s24, 7
      %p84 = scmp.ne.s32.totalorder %s79, %s81
      %p85 = scmp.eq.s32.totalorder %s24, 0
      %p86 = por %p84, %p85
      %p87 = scmp.ne.s32.totalorder %s79, %s81
      %p88 = scmp.eq.s32.totalorder %s29, 7
      %p89 = por %p87, %p88
      %p90 = scmp.ne.s32.totalorder %s81, %s82
      %p91 = scmp.eq.s32.totalorder %s29, 0
      %p92 = por %p90, %p91
      %p93 = scmp.ne.s32.totalorder %s81, %s82
      %p94 = scmp.eq.s32.totalorder %s30, 7
      %p95 = por %p93, %p94
      %p97 = scmp.ne.s32.totalorder %s82, %s96
      %p98 = scmp.eq.s32.totalorder %s30, 0
      %p99 = por %p97, %p98
      %s101 = sadd.s32 %s100, 1
      %p104 = scmp.eq.s32.totalorder %s24, 7
      %p105 = scmp.ne.s32.totalorder %s100, %s102
      %p106 = scmp.eq.s32.totalorder %s24, 0
      %p107 = por %p105, %p106
      %p108 = scmp.ne.s32.totalorder %s100, %s102
      %p109 = scmp.eq.s32.totalorder %s29, 7
      %p110 = por %p108, %p109
      %p111 = scmp.ne.s32.totalorder %s102, %s103
      %p112 = scmp.eq.s32.totalorder %s29, 0
      %p113 = por %p111, %p112
      %p114 = scmp.ne.s32.totalorder %s102, %s103
      %p115 = scmp.eq.s32.totalorder %s30, 7
      %p116 = por %p114, %p115
      %p118 = scmp.ne.s32.totalorder %s103, %s117
      %p119 = scmp.eq.s32.totalorder %s30, 0
      %p120 = por %p118, %p119
      %s122 = sadd.s32 %s121, 1
      %p125 = scmp.eq.s32.totalorder %s24, 7
      %p126 = scmp.ne.s32.totalorder %s121, %s123
      %p127 = scmp.eq.s32.totalorder %s24, 0
      %p128 = por %p126, %p127
      %p129 = scmp.ne.s32.totalorder %s121, %s123
      %p130 = scmp.eq.s32.totalorder %s29, 7
      %p131 = por %p129, %p130
      %p132 = scmp.ne.s32.totalorder %s123, %s124
      %p133 = scmp.eq.s32.totalorder %s29, 0
      %p134 = por %p132, %p133
      %p135 = scmp.ne.s32.totalorder %s123, %s124
      %p136 = scmp.eq.s32.totalorder %s30, 7
      %p137 = por %p135, %p136
      %p139 = scmp.ne.s32.totalorder %s124, %s138
      %p140 = scmp.eq.s32.totalorder %s30, 0
      %p141 = por %p139, %p140
      %s143 = sadd.s32 %s142, 1
      %p146 = scmp.eq.s32.totalorder %s24, 7
      %p147 = scmp.ne.s32.totalorder %s142, %s144
      %p148 = scmp.eq.s32.totalorder %s24, 0
      %p149 = por %p147, %p148
      %p150 = scmp.ne.s32.totalorder %s142, %s144
      %p151 = scmp.eq.s32.totalorder %s29, 7
      %p152 = por %p150, %p151
      %p153 = scmp.ne.s32.totalorder %s144, %s145
      %p154 = scmp.eq.s32.totalorder %s29, 0
      %p155 = por %p153, %p154
      %p156 = scmp.ne.s32.totalorder %s144, %s145
      %p157 = scmp.eq.s32.totalorder %s30, 7
      %p158 = por %p156, %p157
      %p160 = scmp.ne.s32.totalorder %s145, %s159
      %p161 = scmp.eq.s32.totalorder %s30, 0
      %p162 = por %p160, %p161
      %s163 = ssub.s32 %s24, %s31
      %p164 = scmp.eq.s32.totalorder %s163, 0
      %s166 = sadd.s32 %s165, 1
      %s167 = scalar_select %p164, %s165, %s166
      %p170 = pneg %p164
      %p171 = scmp.eq.s32.totalorder %s24, 7
      %p172 = por %p170, %p171
      %p173 = scmp.ne.s32.totalorder %s165, %s168
      %p174 = scmp.eq.s32.totalorder %s24, 0
      %p175 = por %p173, %p174
      %p176 = scmp.ne.s32.totalorder %s165, %s168
      %p177 = scmp.eq.s32.totalorder %s29, 7
      %p178 = por %p176, %p177
      %p179 = scmp.ne.s32.totalorder %s168, %s169
      %p180 = scmp.eq.s32.totalorder %s29, 0
      %p181 = por %p179, %p180
      %p182 = scmp.ne.s32.totalorder %s168, %s169
      %p183 = scmp.eq.s32.totalorder %s30, 7
      %p184 = por %p182, %p183
      %p186 = scmp.ne.s32.totalorder %s169, %s185
      %p187 = scmp.eq.s32.totalorder %s30, 0
      %p188 = por %p186, %p187
      %s190 = sadd.s32 %s189, 1
      %p193 = scmp.eq.s32.totalorder %s24, 7
      %p194 = scmp.ne.s32.totalorder %s189, %s191
      %p195 = scmp.eq.s32.totalorder %s24, 0
      %p196 = por %p194, %p195
      %p197 = scmp.ne.s32.totalorder %s189, %s191
      %p198 = scmp.eq.s32.totalorder %s29, 7
      %p199 = por %p197, %p198
      %p200 = scmp.ne.s32.totalorder %s191, %s192
      %p201 = scmp.eq.s32.totalorder %s29, 0
      %p202 = por %p200, %p201
      %p203 = scmp.ne.s32.totalorder %s191, %s192
      %p204 = scmp.eq.s32.totalorder %s30, 7
      %p205 = por %p203, %p204
      %p207 = scmp.ne.s32.totalorder %s192, %s206
      %p208 = scmp.eq.s32.totalorder %s30, 0
      %p209 = por %p207, %p208
      %s211 = sadd.s32 %s210, 1
      %p214 = scmp.eq.s32.totalorder %s24, 7
      %p215 = scmp.ne.s32.totalorder %s210, %s212
      %p216 = scmp.eq.s32.totalorder %s24, 0
      %p217 = por %p215, %p216
      %p218 = scmp.ne.s32.totalorder %s210, %s212
      %p219 = scmp.eq.s32.totalorder %s29, 7
      %p220 = por %p218, %p219
      %p221 = scmp.ne.s32.totalorder %s212, %s213
      %p222 = scmp.eq.s32.totalorder %s29, 0
      %p223 = por %p221, %p222
      %p224 = scmp.ne.s32.totalorder %s212, %s213
      %p225 = scmp.eq.s32.totalorder %s30, 7
      %p226 = por %p224, %p225
      %p228 = scmp.ne.s32.totalorder %s213, %s227
      %p229 = scmp.eq.s32.totalorder %s30, 0
      %p230 = por %p228, %p229
      %p231 = scmp.le.s32.totalorder 1, %s24
      %p232 = scmp.lt.s32.totalorder %s24, 9
      %p233 = pnand %p231, %p232
      %p234 = pneg %p233
      // Predicated region
      $region9: #{tpu_custom_call.1} parent=5 // pred_check
        _
      $region10: #{tpu_custom_call.1} parent=5 // pred_check_branch
        %236 = sbr.rel (%p233) target = $region12
      $region11: #{tpu_custom_call.1} parent=5 // pred_region
        %s237 = ssub.s32 %s24, 1
        // Predicated region
        $region13: #{tpu_custom_call.1} parent=11 // pred_check
          %p238 = pneg %p71
        $region14: #{tpu_custom_call.1} parent=11 // pred_check_branch
          %240 = sbr.rel (%p238) target = $region16
        $region15: #{tpu_custom_call.1} parent=11 // pred_region
          %s242 = ssub.s32 128, 128
          %243 = vsyncadd [#allocation8], %s242
          %s245 = sshll.u32 [#allocation7], 4
          %s246 = int_to_ptr.vmem [resolvable:$true] %s245
          %248 = dma.hbm_to_vmem [thread:$0]  %s1, 128, %s246, [#allocation8]
        $region16: #{tpu_custom_call.1} parent=11 // pred_fallthru
          _
        // Predicated region
        $region17: #{tpu_custom_call.1} parent=11 // pred_check
          %p249 = pneg %p92
        $region18: #{tpu_custom_call.1} parent=11 // pred_check_branch
          %251 = sbr.rel (%p249) target = $region20
        $region19: #{tpu_custom_call.1} parent=11 // pred_region
          %s253 = ssub.s32 128, 128
          %254 = vsyncadd [#allocation8], %s253
          %s256 = sshll.u32 [#allocation9], 4
          %s257 = int_to_ptr.vmem [resolvable:$true] %s256
          %259 = dma.hbm_to_vmem [thread:$0]  %s2, 128, %s257, [#allocation8]
        $region20: #{tpu_custom_call.1} parent=11 // pred_fallthru
          _
        // Predicated region
        $region21: #{tpu_custom_call.1} parent=11 // pred_check
          %p260 = pneg %p113
        $region22: #{tpu_custom_call.1} parent=11 // pred_check_branch
          %262 = sbr.rel (%p260) target = $region24
        $region23: #{tpu_custom_call.1} parent=11 // pred_region
          %s264 = ssub.s32 1024, 1024
          %265 = vsyncadd [#allocation11], %s264
          %s266 = sshll.u32 [#allocation10], 4
          %s267 = int_to_ptr.vmem [resolvable:$true] %s266
          %272 = dma.hbm_to_vmem [thread:$0]  %s3, 1024, %s267, [#allocation11], 512, 512, 32
        $region24: #{tpu_custom_call.1} parent=11 // pred_fallthru
          _
        // Predicated region
        $region25: #{tpu_custom_call.1} parent=11 // pred_check
          %p273 = pneg %p134
        $region26: #{tpu_custom_call.1} parent=11 // pred_check_branch
          %275 = sbr.rel (%p273) target = $region28
        $region27: #{tpu_custom_call.1} parent=11 // pred_region
          %s277 = ssub.s32 8192, 8192
          %278 = vsyncadd [#allocation11], %s277
          %s279 = sshll.u32 [#allocation12], 4
          %s280 = int_to_ptr.vmem [resolvable:$true] %s279
          %285 = dma.hbm_to_vmem [thread:$0]  %s4, 8192, %s280, [#allocation11], 512, 512, 32
        $region28: #{tpu_custom_call.1} parent=11 // pred_fallthru
          _
        // Predicated region
        $region29: #{tpu_custom_call.1} parent=11 // pred_check
          %p286 = pneg %p155
        $region30: #{tpu_custom_call.1} parent=11 // pred_check_branch
          %288 = sbr.rel (%p286) target = $region32
        $region31: #{tpu_custom_call.1} parent=11 // pred_region
          _
        $region32: #{tpu_custom_call.1} parent=11 // pred_fallthru
          _
      $region12: #{tpu_custom_call.1} parent=5 // pred_fallthru
        _
      %p289 = scmp.lt.s32.totalorder %s24, 8
      // Predicated region
      $region33: #{tpu_custom_call.1} parent=5 // pred_check
        %p290 = pneg %p289
      $region34: #{tpu_custom_call.1} parent=5 // pred_check_branch
        %292 = sbr.rel (%p290) target = $region36
      $region35: #{tpu_custom_call.1} parent=5 // pred_region
        // Predicated region
        $region37: #{tpu_custom_call.1} parent=35 // pred_check
          %p293 = pneg %p44
        $region38: #{tpu_custom_call.1} parent=35 // pred_check_branch
          %295 = sbr.rel (%p293) target = $region40
        $region39: #{tpu_custom_call.1} parent=35 // pred_region
          %s296 = sand.u32 %s34, 1
          %s297 = scalar_lea.sflag [#allocation5], %s296
          %s298 = sand.u32 %s34, 1
          %s299 = smul.addr %s298, 8
          %s300 = scalar_lea.vmem [#allocation4], %s299
          %s302 = ssub.s32 128, 128
          %303 = vsyncadd %s297, %s302
          %s304 = smul.addr %s24, 128
          %s305 = scalar_lea.hbm %s0, %s304
          %s307 = sshll.u32 %s300, 4
          %s308 = int_to_ptr.vmem [resolvable:$true] %s307
          %310 = dma.hbm_to_vmem [thread:$0]  %s305, 128, %s308, %s297
        $region40: #{tpu_custom_call.1} parent=35 // pred_fallthru
          _
      $region36: #{tpu_custom_call.1} parent=5 // pred_fallthru
        _
      %p311 = scmp.le.s32.totalorder 1, %s24
      %p312 = scmp.lt.s32.totalorder %s24, 9
      %p313 = pnand %p311, %p312
      %p314 = pneg %p313
      // Predicated region
      $region41: #{tpu_custom_call.1} parent=5 // pred_check
        _
      $region42: #{tpu_custom_call.1} parent=5 // pred_check_branch
        %316 = sbr.rel (%p313) target = $region44
      $region43: #{tpu_custom_call.1} parent=5 // pred_region
        %s317 = ssub.s32 %s24, 1
        %s318 = sand.u32 %s37, 1
        %s319 = scalar_lea.sflag [#allocation5], %s318
        %s320 = sand.u32 %s37, 1
        %s321 = smul.addr %s320, 8
        %s322 = scalar_lea.vmem [#allocation4], %s321
        // Predicated region
        $region45: #{tpu_custom_call.1} parent=43 // pred_check
          %p323 = pneg %p50
        $region46: #{tpu_custom_call.1} parent=43 // pred_check_branch
          %325 = sbr.rel (%p323) target = $region48
        $region47: #{tpu_custom_call.1} parent=43 // pred_region
          %326 = dma.done %s319, 128
        $region48: #{tpu_custom_call.1} parent=43 // pred_fallthru
          _
        // Predicated region
        $region49: #{tpu_custom_call.1} parent=43 // pred_check
          %p327 = pneg %p71
        $region50: #{tpu_custom_call.1} parent=43 // pred_check_branch
          %329 = sbr.rel (%p327) target = $region52
        $region51: #{tpu_custom_call.1} parent=43 // pred_region
          %330 = dma.done [#allocation8], 128
        $region52: #{tpu_custom_call.1} parent=43 // pred_fallthru
          _
        // Predicated region
        $region53: #{tpu_custom_call.1} parent=43 // pred_check
          %p331 = pneg %p92
        $region54: #{tpu_custom_call.1} parent=43 // pred_check_branch
          %333 = sbr.rel (%p331) target = $region56
        $region55: #{tpu_custom_call.1} parent=43 // pred_region
          %334 = dma.done [#allocation8], 128
        $region56: #{tpu_custom_call.1} parent=43 // pred_fallthru
          _
        // Predicated region
        $region57: #{tpu_custom_call.1} parent=43 // pred_check
          %p335 = pneg %p113
        $region58: #{tpu_custom_call.1} parent=43 // pred_check_branch
          %337 = sbr.rel (%p335) target = $region60
        $region59: #{tpu_custom_call.1} parent=43 // pred_region
          %338 = dma.done [#allocation11], 1024
        $region60: #{tpu_custom_call.1} parent=43 // pred_fallthru
          _
        // Predicated region
        $region61: #{tpu_custom_call.1} parent=43 // pred_check
          %p339 = pneg %p134
        $region62: #{tpu_custom_call.1} parent=43 // pred_check_branch
          %341 = sbr.rel (%p339) target = $region64
        $region63: #{tpu_custom_call.1} parent=43 // pred_region
          %342 = dma.done [#allocation11], 8192
        $region64: #{tpu_custom_call.1} parent=43 // pred_fallthru
          _
        %s343 = sand.u32 %s37, 1
        %s344 = scalar_lea.sflag [#allocation5], %s343
        %s345 = sand.u32 %s37, 1
        %s346 = smul.addr %s345, 8
        %s347 = scalar_lea.vmem [#allocation4], %s346
        %p348 = pneg %p50
        %p349 = pneg %p47
        %p350 = pneg %p71
        %p351 = pneg %p68
        %p352 = pneg %p92
        %p353 = pneg %p89
        %p354 = pneg %p113
        %p355 = pneg %p110
        %p356 = pneg %p134
        %p357 = pneg %p131
        %p358 = pneg %p155
        %p359 = pneg %p152
        %p360 = pneg %p181
        %p361 = pneg %p178
        %s362 = sand.u32 %s168, 1
        %s363 = scalar_lea.sflag [#allocation6], %s362
        %s364 = sand.u32 %s168, 1
        %s365 = smul.addr %s364, 8
        %s366 = scalar_lea.vmem [#allocation13], %s365
        %p367 = pneg %p202
        %p368 = pneg %p199
        %p369 = pneg %p223
        %p370 = pneg %p220
        %p371 = scmp.eq.s32.totalorder %s29, 0
        // Predicated region
        $region65: #{tpu_custom_call.1} parent=43 // pred_check
          %p372 = pneg %p371
        $region66: #{tpu_custom_call.1} parent=43 // pred_check_branch
          %374 = sbr.rel (%p372) target = $region68
        $region67: #{tpu_custom_call.1} parent=43 // pred_region
          %v375 = vld [vmem:[#allocation7] sm:$0xff]
          %376 = vst [vmem:[#allocation2] sm:$0xff] %v375
          %v377 = vld [vmem:[#allocation9] sm:$0xff]
          %378 = vst [vmem:[#allocation3] sm:$0xff] %v377
        $region68: #{tpu_custom_call.1} parent=43 // pred_fallthru
          _
        %v379 = vld [vmem:[%s322] sm:$0xff]
        %v380 = vld [vmem:[#allocation3] sm:$0xff]
        %v381 = vld [vmem:[#allocation10] sm:$0xff]
        %v382 = vld [vmem:[#allocation10 + $0x8] sm:$0xff]
        %v383 = vld [vmem:[#allocation10 + $0x10] sm:$0xff]
        %v384 = vld [vmem:[#allocation10 + $0x18] sm:$0xff]
        %v385 = vld [vmem:[#allocation10 + $0x20] sm:$0xff]
        %v386 = vld [vmem:[#allocation10 + $0x28] sm:$0xff]
        %v387 = vld [vmem:[#allocation10 + $0x30] sm:$0xff]
        %v388 = vld [vmem:[#allocation10 + $0x38] sm:$0xff]
        %v389 = vld [vmem:[#allocation12] sm:$0xff]
        %v390 = vld [vmem:[#allocation12 + $0x8] sm:$0xff]
        %v391 = vld [vmem:[#allocation12 + $0x10] sm:$0xff]
        %v392 = vld [vmem:[#allocation12 + $0x18] sm:$0xff]
        %v393 = vld [vmem:[#allocation12 + $0x20] sm:$0xff]
        %v394 = vld [vmem:[#allocation12 + $0x28] sm:$0xff]
        %v395 = vld [vmem:[#allocation12 + $0x30] sm:$0xff]
        %v396 = vld [vmem:[#allocation12 + $0x38] sm:$0xff]
        %v397 = vld [vmem:[#allocation12 + $0x40] sm:$0xff]
        %v398 = vld [vmem:[#allocation12 + $0x48] sm:$0xff]
        %v399 = vld [vmem:[#allocation12 + $0x50] sm:$0xff]
        %v400 = vld [vmem:[#allocation12 + $0x58] sm:$0xff]
        %v401 = vld [vmem:[#allocation12 + $0x60] sm:$0xff]
        %v402 = vld [vmem:[#allocation12 + $0x68] sm:$0xff]
        %v403 = vld [vmem:[#allocation12 + $0x70] sm:$0xff]
        %v404 = vld [vmem:[#allocation12 + $0x78] sm:$0xff]
        %v405 = vld [vmem:[#allocation12 + $0x80] sm:$0xff]
        %v406 = vld [vmem:[#allocation12 + $0x88] sm:$0xff]
        %v407 = vld [vmem:[#allocation12 + $0x90] sm:$0xff]
        %v408 = vld [vmem:[#allocation12 + $0x98] sm:$0xff]
        %v409 = vld [vmem:[#allocation12 + $0xa0] sm:$0xff]
        %v410 = vld [vmem:[#allocation12 + $0xa8] sm:$0xff]
        %v411 = vld [vmem:[#allocation12 + $0xb0] sm:$0xff]
        %v412 = vld [vmem:[#allocation12 + $0xb8] sm:$0xff]
        %v413 = vld [vmem:[#allocation12 + $0xc0] sm:$0xff]
        %v414 = vld [vmem:[#allocation12 + $0xc8] sm:$0xff]
        %v415 = vld [vmem:[#allocation12 + $0xd0] sm:$0xff]
        %v416 = vld [vmem:[#allocation12 + $0xd8] sm:$0xff]
        %v417 = vld [vmem:[#allocation12 + $0xe0] sm:$0xff]
        %v418 = vld [vmem:[#allocation12 + $0xe8] sm:$0xff]
        %v419 = vld [vmem:[#allocation12 + $0xf0] sm:$0xff]
        %v420 = vld [vmem:[#allocation12 + $0xf8] sm:$0xff]
        %v421 = vld [vmem:[#allocation12 + $0x100] sm:$0xff]
        %v422 = vld [vmem:[#allocation12 + $0x108] sm:$0xff]
        %v423 = vld [vmem:[#allocation12 + $0x110] sm:$0xff]
        %v424 = vld [vmem:[#allocation12 + $0x118] sm:$0xff]
        %v425 = vld [vmem:[#allocation12 + $0x120] sm:$0xff]
        %v426 = vld [vmem:[#allocation12 + $0x128] sm:$0xff]
        %v427 = vld [vmem:[#allocation12 + $0x130] sm:$0xff]
        %v428 = vld [vmem:[#allocation12 + $0x138] sm:$0xff]
        %v429 = vld [vmem:[#allocation12 + $0x140] sm:$0xff]
        %v430 = vld [vmem:[#allocation12 + $0x148] sm:$0xff]
        %v431 = vld [vmem:[#allocation12 + $0x150] sm:$0xff]
        %v432 = vld [vmem:[#allocation12 + $0x158] sm:$0xff]
        %v433 = vld [vmem:[#allocation12 + $0x160] sm:$0xff]
        %v434 = vld [vmem:[#allocation12 + $0x168] sm:$0xff]
        %v435 = vld [vmem:[#allocation12 + $0x170] sm:$0xff]
        %v436 = vld [vmem:[#allocation12 + $0x178] sm:$0xff]
        %v437 = vld [vmem:[#allocation12 + $0x180] sm:$0xff]
        %v438 = vld [vmem:[#allocation12 + $0x188] sm:$0xff]
        %v439 = vld [vmem:[#allocation12 + $0x190] sm:$0xff]
        %v440 = vld [vmem:[#allocation12 + $0x198] sm:$0xff]
        %v441 = vld [vmem:[#allocation12 + $0x1a0] sm:$0xff]
        %v442 = vld [vmem:[#allocation12 + $0x1a8] sm:$0xff]
        %v443 = vld [vmem:[#allocation12 + $0x1b0] sm:$0xff]
        %v444 = vld [vmem:[#allocation12 + $0x1b8] sm:$0xff]
        %v445 = vld [vmem:[#allocation12 + $0x1c0] sm:$0xff]
        %v446 = vld [vmem:[#allocation12 + $0x1c8] sm:$0xff]
        %v447 = vld [vmem:[#allocation12 + $0x1d0] sm:$0xff]
        %v448 = vld [vmem:[#allocation12 + $0x1d8] sm:$0xff]
        %v449 = vld [vmem:[#allocation12 + $0x1e0] sm:$0xff]
        %v450 = vld [vmem:[#allocation12 + $0x1e8] sm:$0xff]
        %v451 = vld [vmem:[#allocation12 + $0x1f0] sm:$0xff]
        %v452 = vld [vmem:[#allocation12 + $0x1f8] sm:$0xff]
        %453 = vmatprep.subr.mxu0 %v450
        %454 = vmatpush1.msra.mxu0 %v449
        %455 = vmatprep.subr.mxu0 %v446
        %456 = vmatpush1.msra.mxu0 %v445
        %457 = vmatprep.subr.mxu0 %v442
        %458 = vmatpush1.msra.mxu0 %v441
        %459 = vmatprep.subr.mxu0 %v438
        %460 = vmatpush1.msra.mxu0 %v437
        %461 = vmatprep.subr.mxu0 %v434
        %462 = vmatpush1.msra.mxu0 %v433
        %463 = vmatprep.subr.mxu0 %v430
        %464 = vmatpush1.msra.mxu0 %v429
        %465 = vmatprep.subr.mxu0 %v426
        %466 = vmatpush1.msra.mxu0 %v425
        %467 = vmatprep.subr.mxu0 %v422
        %468 = vmatpush1.msra.mxu0 %v421
        %469 = vmatprep.subr.mxu0 %v418
        %470 = vmatpush1.msra.mxu0 %v417
        %471 = vmatprep.subr.mxu0 %v414
        %472 = vmatpush1.msra.mxu0 %v413
        %473 = vmatprep.subr.mxu0 %v410
        %474 = vmatpush1.msra.mxu0 %v409
        %475 = vmatprep.subr.mxu0 %v406
        %476 = vmatpush1.msra.mxu0 %v405
        %477 = vmatprep.subr.mxu0 %v402
        %478 = vmatpush1.msra.mxu0 %v401
        %479 = vmatprep.subr.mxu0 %v398
        %480 = vmatpush1.msra.mxu0 %v397
        %481 = vmatprep.subr.mxu0 %v394
        %482 = vmatpush1.msra.mxu0 %v393
        %483 = vmatprep.subr.mxu0 %v390
        %484 = vmatpush1.msra.mxu0 %v389
        %485 = vmatprep.subr.mxu0 0.0
        %486 = vmatpush2.msra.mxu0 0.0
        %487 = vmatprep.subr.mxu0 0.0
        %488 = vmatpush2.msra.mxu0 0.0
        %489 = vmatprep.subr.mxu0 0.0
        %490 = vmatpush2.msra.mxu0 0.0
        %491 = vmatprep.subr.mxu0 0.0
        %492 = vmatpush2.msra.mxu0 0.0
        %493 = vmatprep.subr.mxu0 0.0
        %494 = vmatpush2.msra.mxu0 0.0
        %495 = vmatprep.subr.mxu0 0.0
        %496 = vmatpush2.msra.mxu0 0.0
        %497 = vmatprep.subr.mxu0 0.0
        %498 = vmatpush2.msra.mxu0 0.0
        %499 = vmatprep.subr.mxu0 0.0
        %500 = vmatpush2.msra.mxu0 0.0
        %501 = vmatprep.subr.mxu0 0.0
        %502 = vmatpush2.msra.mxu0 0.0
        %503 = vmatprep.subr.mxu0 0.0
        %504 = vmatpush2.msra.mxu0 0.0
        %505 = vmatprep.subr.mxu0 0.0
        %506 = vmatpush2.msra.mxu0 0.0
        %507 = vmatprep.subr.mxu0 0.0
        %508 = vmatpush2.msra.mxu0 0.0
        %509 = vmatprep.subr.mxu0 0.0
        %510 = vmatpush2.msra.mxu0 0.0
        %511 = vmatprep.subr.mxu0 0.0
        %512 = vmatpush2.msra.mxu0 0.0
        %513 = vmatprep.subr.mxu0 0.0
        %514 = vmatpush2.msra.mxu0 0.0
        %515 = vmatprep.subr.mxu0 0.0
        %516 = vmatpush2.msra.mxu0 0.0
        %517 = vmatprep.mubr.f32.mxu0 0.0
        %518 = vmatmul.mubr.f32.gmra.mxu0 %v380
        %v519 = vpop.f32.mrf.mxu0
        %v520 = vadd.f32 0.0, %v519
        %v521 = vpop.f32.mrf.mxu0
        %v522 = vadd.f32 0.0, %v521
        %523 = vdwg.mxu0
        %524 = vmatprep.subr.mxu0 %v452
        %525 = vmatpush1.msra.mxu0 %v451
        %526 = vmatprep.subr.mxu0 %v448
        %527 = vmatpush1.msra.mxu0 %v447
        %528 = vmatprep.subr.mxu0 %v444
        %529 = vmatpush1.msra.mxu0 %v443
        %530 = vmatprep.subr.mxu0 %v440
        %531 = vmatpush1.msra.mxu0 %v439
        %532 = vmatprep.subr.mxu0 %v436
        %533 = vmatpush1.msra.mxu0 %v435
        %534 = vmatprep.subr.mxu0 %v432
        %535 = vmatpush1.msra.mxu0 %v431
        %536 = vmatprep.subr.mxu0 %v428
        %537 = vmatpush1.msra.mxu0 %v427
        %538 = vmatprep.subr.mxu0 %v424
        %539 = vmatpush1.msra.mxu0 %v423
        %540 = vmatprep.subr.mxu0 %v420
        %541 = vmatpush1.msra.mxu0 %v419
        %542 = vmatprep.subr.mxu0 %v416
        %543 = vmatpush1.msra.mxu0 %v415
        %544 = vmatprep.subr.mxu0 %v412
        %545 = vmatpush1.msra.mxu0 %v411
        %546 = vmatprep.subr.mxu0 %v408
        %547 = vmatpush1.msra.mxu0 %v407
        %548 = vmatprep.subr.mxu0 %v404
        %549 = vmatpush1.msra.mxu0 %v403
        %550 = vmatprep.subr.mxu0 %v400
        %551 = vmatpush1.msra.mxu0 %v399
        %552 = vmatprep.subr.mxu0 %v396
        %553 = vmatpush1.msra.mxu0 %v395
        %554 = vmatprep.subr.mxu0 %v392
        %555 = vmatpush1.msra.mxu0 %v391
        %556 = vmatprep.subr.mxu0 0.0
        %557 = vmatpush2.msra.mxu0 0.0
        %558 = vmatprep.subr.mxu0 0.0
        %559 = vmatpush2.msra.mxu0 0.0
        %560 = vmatprep.subr.mxu0 0.0
        %561 = vmatpush2.msra.mxu0 0.0
        %562 = vmatprep.subr.mxu0 0.0
        %563 = vmatpush2.msra.mxu0 0.0
        %564 = vmatprep.subr.mxu0 0.0
        %565 = vmatpush2.msra.mxu0 0.0
        %566 = vmatprep.subr.mxu0 0.0
        %567 = vmatpush2.msra.mxu0 0.0
        %568 = vmatprep.subr.mxu0 0.0
        %569 = vmatpush2.msra.mxu0 0.0
        %570 = vmatprep.subr.mxu0 0.0
        %571 = vmatpush2.msra.mxu0 0.0
        %572 = vmatprep.subr.mxu0 0.0
        %573 = vmatpush2.msra.mxu0 0.0
        %574 = vmatprep.subr.mxu0 0.0
        %575 = vmatpush2.msra.mxu0 0.0
        %576 = vmatprep.subr.mxu0 0.0
        %577 = vmatpush2.msra.mxu0 0.0
        %578 = vmatprep.subr.mxu0 0.0
        %579 = vmatpush2.msra.mxu0 0.0
        %580 = vmatprep.subr.mxu0 0.0
        %581 = vmatpush2.msra.mxu0 0.0
        %582 = vmatprep.subr.mxu0 0.0
        %583 = vmatpush2.msra.mxu0 0.0
        %584 = vmatprep.subr.mxu0 0.0
        %585 = vmatpush2.msra.mxu0 0.0
        %586 = vmatprep.subr.mxu0 0.0
        %587 = vmatpush2.msra.mxu0 0.0
        %588 = vmatprep.mubr.f32.mxu0 0.0
        %589 = vmatmul.mubr.f32.gmra.mxu0 %v380
        %v590 = vpop.f32.mrf.mxu0
        %v591 = vadd.f32 0.0, %v590
        %v592 = vpop.f32.mrf.mxu0
        %v593 = vadd.f32 0.0, %v592
        %594 = vdwg.mxu0
        %vm595 = vcmask 130048
        %v597 = vsel %vm595, %v379, 0
        %599 = vmatprep.subr.mxu0 0.0
        %600 = vmatpush1.msra.mxu0 0.0
        %601 = vmatprep.subr.mxu0 0.0
        %602 = vmatpush1.msra.mxu0 0.0
        %603 = vmatprep.subr.mxu0 0.0
        %604 = vmatpush1.msra.mxu0 0.0
        %605 = vmatprep.subr.mxu0 0.0
        %606 = vmatpush1.msra.mxu0 0.0
        %607 = vmatprep.subr.mxu0 0.0
        %608 = vmatpush1.msra.mxu0 0.0
        %609 = vmatprep.subr.mxu0 0.0
        %610 = vmatpush1.msra.mxu0 0.0
        %611 = vmatprep.subr.mxu0 0.0
        %612 = vmatpush1.msra.mxu0 0.0
        %613 = vmatprep.subr.mxu0 0.0
        %614 = vmatpush1.msra.mxu0 0.0
        %615 = vmatprep.subr.mxu0 0.0
        %616 = vmatpush1.msra.mxu0 0.0
        %617 = vmatprep.subr.mxu0 0.0
        %618 = vmatpush1.msra.mxu0 0.0
        %619 = vmatprep.subr.mxu0 0.0
        %620 = vmatpush1.msra.mxu0 0.0
        %621 = vmatprep.subr.mxu0 0.0
        %622 = vmatpush1.msra.mxu0 0.0
        %623 = vmatprep.subr.mxu0 0.0
        %624 = vmatpush1.msra.mxu0 0.0
        %625 = vmatprep.subr.mxu0 0.0
        %626 = vmatpush1.msra.mxu0 0.0
        %627 = vmatprep.subr.mxu0 %v386
        %628 = vmatpush1.msra.mxu0 %v385
        %629 = vmatprep.subr.mxu0 %v382
        %630 = vmatpush1.msra.mxu0 %v381
        %631 = vmatprep.subr.mxu0 0.0
        %632 = vmatpush2.msra.mxu0 0.0
        %633 = vmatprep.subr.mxu0 0.0
        %634 = vmatpush2.msra.mxu0 0.0
        %635 = vmatprep.subr.mxu0 0.0
        %636 = vmatpush2.msra.mxu0 0.0
        %637 = vmatprep.subr.mxu0 0.0
        %638 = vmatpush2.msra.mxu0 0.0
        %639 = vmatprep.subr.mxu0 0.0
        %640 = vmatpush2.msra.mxu0 0.0
        %641 = vmatprep.subr.mxu0 0.0
        %642 = vmatpush2.msra.mxu0 0.0
        %643 = vmatprep.subr.mxu0 0.0
        %644 = vmatpush2.msra.mxu0 0.0
        %645 = vmatprep.subr.mxu0 0.0
        %646 = vmatpush2.msra.mxu0 0.0
        %647 = vmatprep.subr.mxu0 0.0
        %648 = vmatpush2.msra.mxu0 0.0
        %649 = vmatprep.subr.mxu0 0.0
        %650 = vmatpush2.msra.mxu0 0.0
        %651 = vmatprep.subr.mxu0 0.0
        %652 = vmatpush2.msra.mxu0 0.0
        %653 = vmatprep.subr.mxu0 0.0
        %654 = vmatpush2.msra.mxu0 0.0
        %655 = vmatprep.subr.mxu0 0.0
        %656 = vmatpush2.msra.mxu0 0.0
        %657 = vmatprep.subr.mxu0 0.0
        %658 = vmatpush2.msra.mxu0 0.0
        %659 = vmatprep.subr.mxu0 0.0
        %660 = vmatpush2.msra.mxu0 0.0
        %661 = vmatprep.subr.mxu0 0.0
        %662 = vmatpush2.msra.mxu0 0.0
        %663 = vmatprep.mubr.f32.mxu0 0.0
        %664 = vmatmul.mubr.f32.gmra.mxu0 %v597
        %v665 = vpop.f32.mrf.mxu0
        %v666 = vadd.f32 %v520, %v665
        %v667 = vpop.f32.mrf.mxu0
        %v668 = vadd.f32 %v522, %v667
        %669 = vdwg.mxu0
        %670 = vmatprep.subr.mxu0 0.0
        %671 = vmatpush1.msra.mxu0 0.0
        %672 = vmatprep.subr.mxu0 0.0
        %673 = vmatpush1.msra.mxu0 0.0
        %674 = vmatprep.subr.mxu0 0.0
        %675 = vmatpush1.msra.mxu0 0.0
        %676 = vmatprep.subr.mxu0 0.0
        %677 = vmatpush1.msra.mxu0 0.0
        %678 = vmatprep.subr.mxu0 0.0
        %679 = vmatpush1.msra.mxu0 0.0
        %680 = vmatprep.subr.mxu0 0.0
        %681 = vmatpush1.msra.mxu0 0.0
        %682 = vmatprep.subr.mxu0 0.0
        %683 = vmatpush1.msra.mxu0 0.0
        %684 = vmatprep.subr.mxu0 0.0
        %685 = vmatpush1.msra.mxu0 0.0
        %686 = vmatprep.subr.mxu0 0.0
        %687 = vmatpush1.msra.mxu0 0.0
        %688 = vmatprep.subr.mxu0 0.0
        %689 = vmatpush1.msra.mxu0 0.0
        %690 = vmatprep.subr.mxu0 0.0
        %691 = vmatpush1.msra.mxu0 0.0
        %692 = vmatprep.subr.mxu0 0.0
        %693 = vmatpush1.msra.mxu0 0.0
        %694 = vmatprep.subr.mxu0 0.0
        %695 = vmatpush1.msra.mxu0 0.0
        %696 = vmatprep.subr.mxu0 0.0
        %697 = vmatpush1.msra.mxu0 0.0
        %698 = vmatprep.subr.mxu0 %v388
        %699 = vmatpush1.msra.mxu0 %v387
        %700 = vmatprep.subr.mxu0 %v384
        %701 = vmatpush1.msra.mxu0 %v383
        %702 = vmatprep.subr.mxu0 0.0
        %703 = vmatpush2.msra.mxu0 0.0
        %704 = vmatprep.subr.mxu0 0.0
        %705 = vmatpush2.msra.mxu0 0.0
        %706 = vmatprep.subr.mxu0 0.0
        %707 = vmatpush2.msra.mxu0 0.0
        %708 = vmatprep.subr.mxu0 0.0
        %709 = vmatpush2.msra.mxu0 0.0
        %710 = vmatprep.subr.mxu0 0.0
        %711 = vmatpush2.msra.mxu0 0.0
        %712 = vmatprep.subr.mxu0 0.0
        %713 = vmatpush2.msra.mxu0 0.0
        %714 = vmatprep.subr.mxu0 0.0
        %715 = vmatpush2.msra.mxu0 0.0
        %716 = vmatprep.subr.mxu0 0.0
        %717 = vmatpush2.msra.mxu0 0.0
        %718 = vmatprep.subr.mxu0 0.0
        %719 = vmatpush2.msra.mxu0 0.0
        %720 = vmatprep.subr.mxu0 0.0
        %721 = vmatpush2.msra.mxu0 0.0
        %722 = vmatprep.subr.mxu0 0.0
        %723 = vmatpush2.msra.mxu0 0.0
        %724 = vmatprep.subr.mxu0 0.0
        %725 = vmatpush2.msra.mxu0 0.0
        %726 = vmatprep.subr.mxu0 0.0
        %727 = vmatpush2.msra.mxu0 0.0
        %728 = vmatprep.subr.mxu0 0.0
        %729 = vmatpush2.msra.mxu0 0.0
        %730 = vmatprep.subr.mxu0 0.0
        %731 = vmatpush2.msra.mxu0 0.0
        %732 = vmatprep.subr.mxu0 0.0
        %733 = vmatpush2.msra.mxu0 0.0
        %734 = vmatprep.mubr.f32.mxu0 0.0
        %735 = vmatmul.mubr.f32.gmra.mxu0 %v597
        %v736 = vpop.f32.mrf.mxu0
        %v737 = vadd.f32 %v591, %v736
        %v738 = vpop.f32.mrf.mxu0
        %v739 = vadd.f32 %v593, %v738
        %740 = vdwg.mxu0
        %v741 = vld [vmem:[%s5] sm:$0xf]
        %v743 = vlaneseq
        %v744 = vshrl.u32 %v743, 7
        %v745 = vsub.s32 0, %v744
        %v746 = vrot.slane %v741, %v745
        %v747 = vlaneseq
        %v748 = vshrl.u32 %v747, 7
        %v749 = vsub.s32 1, %v748
        %v750 = vrot.slane %v741, %v749
        %v751 = vlaneseq
        %v752 = vshrl.u32 %v751, 7
        %v753 = vsub.s32 2, %v752
        %v754 = vrot.slane %v741, %v753
        %v755 = vlaneseq
        %v756 = vshrl.u32 %v755, 7
        %v757 = vsub.s32 3, %v756
        %v758 = vrot.slane %v741, %v757
        %v763 = vadd.f32 %v666, %v746
        %v764 = vadd.f32 %v668, %v750
        %v765 = vadd.f32 %v737, %v754
        %v766 = vadd.f32 %v739, %v758
        %v767 = vxor.u32 %v763, 2147483648
        %v768 = vmul.f32 %v767, 1.442695
        %v769 = vpow.pop %v768
        %v770 = vadd.f32 %v769, 1.0
        %v771 = vrcp.pop %v770
        %v772 = vmul.f32 1.0, %v771
        %v773 = vxor.u32 %v764, 2147483648
        %v774 = vmul.f32 %v773, 1.442695
        %v775 = vpow.pop %v774
        %v776 = vadd.f32 %v775, 1.0
        %v777 = vrcp.pop %v776
        %v778 = vmul.f32 1.0, %v777
        %v779 = vxor.u32 %v765, 2147483648
        %v780 = vmul.f32 %v779, 1.442695
        %v781 = vpow.pop %v780
        %v782 = vadd.f32 %v781, 1.0
        %v783 = vrcp.pop %v782
        %v784 = vmul.f32 1.0, %v783
        %v785 = vtanh.pop %v766
        %v786 = vld [vmem:[#allocation2] sm:$0xff]
        %v787 = vmul.f32 %v772, %v786
        %v788 = vmul.f32 %v778, %v785
        %v789 = vadd.f32 %v787, %v788
        %v790 = vtanh.pop %v789
        %v791 = vmul.f32 %v784, %v790
        %792 = vst [vmem:[#allocation2] sm:$0xff] %v789
        %793 = vst [vmem:[#allocation3] sm:$0xff] %v791
        %794 = vst [vmem:[%s366] sm:$0xff] %v791
        %795 = vst [vmem:[#allocation14] sm:$0xff] %v789
        %796 = vst [vmem:[#allocation16] sm:$0xff] %v791
        %s797 = sand.u32 %s168, 1
        %s798 = scalar_lea.sflag [#allocation6], %s797
        %s799 = sand.u32 %s168, 1
        %s800 = smul.addr %s799, 8
        %s801 = scalar_lea.vmem [#allocation13], %s800
        // Predicated region
        $region69: #{tpu_custom_call.1} parent=43 // pred_check
          %p802 = pneg %p178
        $region70: #{tpu_custom_call.1} parent=43 // pred_check_branch
          %804 = sbr.rel (%p802) target = $region72
        $region71: #{tpu_custom_call.1} parent=43 // pred_region
          %s806 = ssub.s32 128, 128
          %807 = vsyncadd %s798, %s806
          %s808 = smul.addr %s29, 128
          %s809 = scalar_lea.hbm %s6, %s808
          %s811 = sshll.u32 %s801, 4
          %s812 = int_to_ptr.vmem [resolvable:$true] %s811
          %814 = dma.vmem_to_hbm [thread:$0]  %s812, 128, %s809, %s798
        $region72: #{tpu_custom_call.1} parent=43 // pred_fallthru
          _
        // Predicated region
        $region73: #{tpu_custom_call.1} parent=43 // pred_check
          %p815 = pneg %p199
        $region74: #{tpu_custom_call.1} parent=43 // pred_check_branch
          %817 = sbr.rel (%p815) target = $region76
        $region75: #{tpu_custom_call.1} parent=43 // pred_region
          %s819 = ssub.s32 128, 128
          %820 = vsyncadd [#allocation15], %s819
          %s822 = sshll.u32 [#allocation14], 4
          %s823 = int_to_ptr.vmem [resolvable:$true] %s822
          %825 = dma.vmem_to_hbm [thread:$0]  %s823, 128, %s7, [#allocation15]
        $region76: #{tpu_custom_call.1} parent=43 // pred_fallthru
          _
        // Predicated region
        $region77: #{tpu_custom_call.1} parent=43 // pred_check
          %p826 = pneg %p220
        $region78: #{tpu_custom_call.1} parent=43 // pred_check_branch
          %828 = sbr.rel (%p826) target = $region80
        $region79: #{tpu_custom_call.1} parent=43 // pred_region
          %s830 = ssub.s32 128, 128
          %831 = vsyncadd [#allocation15], %s830
          %s833 = sshll.u32 [#allocation16], 4
          %s834 = int_to_ptr.vmem [resolvable:$true] %s833
          %836 = dma.vmem_to_hbm [thread:$0]  %s834, 128, %s8, [#allocation15]
        $region80: #{tpu_custom_call.1} parent=43 // pred_fallthru
          _
        // Predicated region
        $region81: #{tpu_custom_call.1} parent=43 // pred_check
          %p837 = pneg %p199
        $region82: #{tpu_custom_call.1} parent=43 // pred_check_branch
          %839 = sbr.rel (%p837) target = $region84
        $region83: #{tpu_custom_call.1} parent=43 // pred_region
          %840 = dma.done [#allocation15], 128
        $region84: #{tpu_custom_call.1} parent=43 // pred_fallthru
          _
        // Predicated region
        $region85: #{tpu_custom_call.1} parent=43 // pred_check
          %p841 = pneg %p220
        $region86: #{tpu_custom_call.1} parent=43 // pred_check_branch
          %843 = sbr.rel (%p841) target = $region88
        $region87: #{tpu_custom_call.1} parent=43 // pred_region
          %844 = dma.done [#allocation15], 128
        $region88: #{tpu_custom_call.1} parent=43 // pred_fallthru
          _
      $region44: #{tpu_custom_call.1} parent=5 // pred_fallthru
        _
      %p845 = scmp.le.s32.totalorder 2, %s24
      // Predicated region
      $region89: #{tpu_custom_call.1} parent=5 // pred_check
        %p846 = pneg %p845
      $region90: #{tpu_custom_call.1} parent=5 // pred_check_branch
        %848 = sbr.rel (%p846) target = $region92
      $region91: #{tpu_custom_call.1} parent=5 // pred_region
        %s849 = ssub.s32 %s24, 2
        // Predicated region
        $region93: #{tpu_custom_call.1} parent=91 // pred_check
          %p850 = pneg %p184
        $region94: #{tpu_custom_call.1} parent=91 // pred_check_branch
          %852 = sbr.rel (%p850) target = $region96
        $region95: #{tpu_custom_call.1} parent=91 // pred_region
          %s853 = sand.u32 %s169, 1
          %s854 = scalar_lea.sflag [#allocation6], %s853
          %s855 = sand.u32 %s169, 1
          %s856 = smul.addr %s855, 8
          %s857 = scalar_lea.vmem [#allocation13], %s856
          %858 = dma.done %s854, 128
        $region96: #{tpu_custom_call.1} parent=91 // pred_fallthru
          _
      $region92: #{tpu_custom_call.1} parent=5 // pred_fallthru
        _
    $region6: #{tpu_custom_call.1} parent=1 // loop_footer
      %s28 = sadd.s32 1, %s24
    $region7: #{tpu_custom_call.1} parent=1 // loop_footer_branch
      %23 = sbr.rel target = $region3
    $region8: #{tpu_custom_call.1} parent=1 // loop_exit
      _
    %859 = vsyncpa [#allocation5], 1
    %s860 = scalar_lea.sflag [#allocation5], 1
    %861 = vsyncpa %s860, 1
    %862 = vsyncpa [#allocation8], 1
    %863 = vsyncpa [#allocation11], 1
    %864 = vsyncpa [#allocation6], 1
    %s865 = scalar_lea.sflag [#allocation6], 1
    %866 = vsyncpa %s865, 1
    %867 = vsyncpa [#allocation15], 1

</llo_original>
